<compile_context>
chip_gen: v6e
topology: v6e:2x2x1
jax: 0.10.0
libtpu: 0.0.40
codegen_flags: <defaults>
</compile_context>

<pallas_src>
import math
import functools

import jax
import jax.numpy as jnp
from jax.experimental import pallas as pl
from jax.experimental.pallas import tpu as pltpu

LN_EPS = 1e-5                    # PyTorch nn.LayerNorm default


def _vmem_limit_bytes():
    # stay below physical VMEM (v7x: 64 MiB/TC) but above the default scoped limit
    try:
        cap = int(pltpu.get_tpu_info().vmem_capacity_bytes)
        return max(32 * 1024 * 1024, min(cap - 8 * 1024 * 1024, 100 * 1024 * 1024))
    except Exception:
        return 48 * 1024 * 1024


VMEM_LIMIT = _vmem_limit_bytes()


def _layernorm(z, w, b):
    mu = jnp.mean(z, axis=-1, keepdims=True)
    var = jnp.mean((z - mu) ** 2, axis=-1, keepdims=True)
    return (z - mu) * jax.lax.rsqrt(var + LN_EPS) * w + b


def _new_gelu(x):
    return 0.5 * x * (1.0 + jnp.tanh(math.sqrt(2.0 / math.pi) * (x + 0.044715 * x ** 3)))


def _round_up(x, m):
    return ((x + m - 1) // m) * m


def _pick_tile(n, cands=(256, 128)):
    for c in cands:
        if n % c == 0:
            return c
    return n


def _const_spec(shape):
    """Grid-invariant (weight) tile: single-buffered to halve resident VMEM."""
    nd = len(shape)
    idx = lambda *_: (0,) * nd
    try:
        return pl.BlockSpec(shape, idx, pipeline_mode=pl.Buffered(buffer_count=1))
    except Exception:   # older jax without pipeline_mode / Buffered
        return pl.BlockSpec(shape, idx)


# ----------------------------- Pallas kernels -----------------------------

def attn_kernel(x_ref, ln1w_ref, ln1b_ref, wqkv_ref, bqkv_ref,
                wproj_ref, bproj_ref, o_ref, qkv_scr, heads_scr, *, n_head):
    x = x_ref[...]                                   # (T, D) f32
    T, D = x.shape
    hd = D // n_head
    scale = 1.0 / math.sqrt(hd)

    h = _layernorm(x, ln1w_ref[...], ln1b_ref[...])
    qkv = jnp.dot(h.astype(jnp.bfloat16), wqkv_ref[...],
                  preferred_element_type=jnp.float32) + bqkv_ref[...]   # (T, 3D) f32
    # write once; per-head q/k/v come back as cheap static ref slices (no value relayout)
    qkv_scr[...] = qkv.astype(jnp.bfloat16)

    # causal mask built once, hoisted out of the head loop
    row = jax.lax.broadcasted_iota(jnp.int32, (T, T), 0)
    col = jax.lax.broadcasted_iota(jnp.int32, (T, T), 1)
    causal = col <= row

    for hh in range(n_head):                         # static, unrolled
        q_sl = slice(hh * hd, (hh + 1) * hd)
        k_sl = slice(D + hh * hd, D + (hh + 1) * hd)
        v_sl = slice(2 * D + hh * hd, 2 * D + (hh + 1) * hd)

        qh = qkv_scr[:, q_sl] * scale                # fold 1/sqrt(hd) into (T,hd) q tile
        kh = qkv_scr[:, k_sl]
        vh = qkv_scr[:, v_sl]

        att = jax.lax.dot_general(qh, kh, (((1,), (1,)), ((), ())),
                                  preferred_element_type=jnp.float32)   # (T, T)
        att = jnp.where(causal, att, -jnp.inf)
        att = att - jnp.max(att, axis=-1, keepdims=True)
        e = jnp.exp(att)
        denom = jnp.sum(e, axis=-1, keepdims=True)                      # (T, 1)
        head = jnp.dot(e.astype(jnp.bfloat16), vh,
                       preferred_element_type=jnp.float32)              # (T, hd)
        # normalize the small (T,hd) output instead of the (T,T) score tile
        head = head * pl.reciprocal(denom, approx=True)
        heads_scr[:, q_sl] = head.astype(jnp.bfloat16)

    # ONE full-depth (T,D)@(D,D) c_proj matmul (MXU-efficient, lane-dense output)
    y = jnp.dot(heads_scr[...], wproj_ref[...], preferred_element_type=jnp.float32)
    # attn/resid dropout = identity (eval)
    o_ref[...] = x + y + bproj_ref[...]


def mlp_kernel(x_ref, ln2w_ref, ln2b_ref, wfc_ref, bfc_ref,
               wmp_ref, bmp_ref, o_ref):
    x = x_ref[...]                                   # (tt, D) f32
    h = _layernorm(x, ln2w_ref[...], ln2b_ref[...])
    h = jnp.dot(h.astype(jnp.bfloat16), wfc_ref[...],
                preferred_element_type=jnp.float32) + bfc_ref[...]
    # reference Sequential order: c_fc -> c_proj -> NewGELU -> dropout (identity)
    h = jnp.dot(h.astype(jnp.bfloat16), wmp_ref[...],
                preferred_element_type=jnp.float32) + bmp_ref[...]
    o_ref[...] = x + _new_gelu(h)


def lnf_kernel(x_ref, w_ref, b_ref, o32_ref, obf_ref):
    y = _layernorm(x_ref[...], w_ref[...], b_ref[...])
    o32_ref[...] = y                                 # f32 return value
    obf_ref[...] = y.astype(jnp.bfloat16)            # cast once for lm_head


def lm_head_kernel(xn_ref, wlm_ref, logits_ref):
    logits_ref[...] = jnp.dot(xn_ref[...], wlm_ref[...],
                              preferred_element_type=jnp.float32)


# ------------------------------- wrappers ---------------------------------

def run_attn(x, blk, n_head):
    B, T, D = x.shape
    weights = (blk["ln1_w"], blk["ln1_b"], blk["wqkv"], blk["bqkv"],
               blk["wproj"], blk["bproj"])
    return pl.pallas_call(
        functools.partial(attn_kernel, n_head=n_head),
        out_shape=jax.ShapeDtypeStruct((B, T, D), x.dtype),
        grid=(B,),
        in_specs=[pl.BlockSpec((None, T, D), lambda b: (b, 0, 0))]
                 + [_const_spec(w.shape) for w in weights],
        out_specs=pl.BlockSpec((None, T, D), lambda b: (b, 0, 0)),
        scratch_shapes=[pltpu.VMEM((T, 3 * D), jnp.bfloat16),   # qkv
                        pltpu.VMEM((T, D), jnp.bfloat16)],      # gathered heads
        compiler_params=pltpu.CompilerParams(
            dimension_semantics=("parallel",),
            vmem_limit_bytes=VMEM_LIMIT),
    )(x, *weights)


def run_mlp(x, blk):
    B, T, D = x.shape
    tt = _pick_tile(T)
    weights = (blk["ln2_w"], blk["ln2_b"], blk["wfc"], blk["bfc"],
               blk["wmp"], blk["bmp"])
    return pl.pallas_call(
        mlp_kernel,
        out_shape=jax.ShapeDtypeStruct((B, T, D), x.dtype),
        grid=(B, T // tt),
        in_specs=[pl.BlockSpec((None, tt, D), lambda b, t: (b, t, 0))]
                 + [_const_spec(w.shape) for w in weights],
        out_specs=pl.BlockSpec((None, tt, D), lambda b, t: (b, t, 0)),
        compiler_params=pltpu.CompilerParams(
            dimension_semantics=("parallel", "parallel"),
            vmem_limit_bytes=VMEM_LIMIT),
    )(x, *weights)


def run_lnf(x, w, b):
    B, T, D = x.shape
    tt = _pick_tile(T)
    row_spec = pl.BlockSpec((None, tt, D), lambda b, t: (b, t, 0))
    return pl.pallas_call(
        lnf_kernel,
        out_shape=(jax.ShapeDtypeStruct((B, T, D), jnp.float32),
                   jax.ShapeDtypeStruct((B, T, D), jnp.bfloat16)),
        grid=(B, T // tt),
        in_specs=[row_spec, _const_spec(w.shape), _const_spec(b.shape)],
        out_specs=(row_spec, row_spec),
        compiler_params=pltpu.CompilerParams(
            dimension_semantics=("parallel", "parallel"),
            vmem_limit_bytes=VMEM_LIMIT),
    )(x, w, b)


def run_lm_head(xn_bf16, wlm_padded, vocab_size):
    B, T, D = xn_bf16.shape
    R = B * T
    V_pad = wlm_padded.shape[1]
    tv = _pick_tile(V_pad, (512, 256, 128))
    tr = _pick_tile(R, (256, 128))
    xn2 = xn_bf16.reshape(R, D)        # contiguous reshape, no copy
    logits = pl.pallas_call(
        lm_head_kernel,
        out_shape=jax.ShapeDtypeStruct((R, V_pad), jnp.float32),
        # vocab OUTER, rows INNER: each (D, tv) wlm tile is reused across all rows,
        # so wlm (the largest tensor) is streamed from HBM exactly once.
        grid=(V_pad // tv, R // tr),
        in_specs=[pl.BlockSpec((tr, D), lambda v, r: (r, 0)),
                  pl.BlockSpec((D, tv), lambda v, r: (0, v))],
        out_specs=pl.BlockSpec((tr, tv), lambda v, r: (r, v)),
        compiler_params=pltpu.CompilerParams(
            dimension_semantics=("parallel", "parallel"),
            vmem_limit_bytes=VMEM_LIMIT),
    )(xn2, wlm_padded)
    logits = logits.reshape(B, T, V_pad)
    if V_pad != vocab_size:
        logits = logits[..., :vocab_size]
    return logits


def gpt_forward(tok_emb, params, n_head, block_size, targets=None):
    b, t, d = tok_emb.shape
    assert t <= block_size
    x = tok_emb                        # embd dropout = identity (eval)
    for blk in params["blocks"]:
        x = run_attn(x, blk, n_head)   # x + attn(ln_1(x))
        x = run_mlp(x, blk)            # x + gelu(c_proj(c_fc(ln_2(x))))
    x_f32, x_bf16 = run_lnf(x, params["lnf_w"], params["lnf_b"])
    logits = run_lm_head(x_bf16, params["wlm"], params["vocab_size"])
    loss = None                        # TODO(synk): targets / cross-entropy path
    return x_f32, logits, loss


# ------------------------------- init -------------------------------------

def init_params(key, n_layer, n_embd, vocab_size):
    std = 0.02
    proj_std = 0.02 / math.sqrt(2 * n_layer)   # c_proj.weight special init
    wdt = jnp.bfloat16                          # big matrices stored bf16
    blocks = []
    for _ in range(n_layer):
        key, k0, k1, k2, k3 = jax.random.split(key, 5)
        blocks.append(dict(
            ln1_w=jnp.ones((1, n_embd), jnp.float32),
            ln1_b=jnp.zeros((1, n_embd), jnp.float32),
            wqkv=(std * jax.random.normal(k0, (n_embd, 3 * n_embd), jnp.float32)).astype(wdt),
            bqkv=jnp.zeros((1, 3 * n_embd), jnp.float32),
            wproj=(proj_std * jax.random.normal(k1, (n_embd, n_embd), jnp.float32)).astype(wdt),
            bproj=jnp.zeros((1, n_embd), jnp.float32),
            ln2_w=jnp.ones((1, n_embd), jnp.float32),
            ln2_b=jnp.zeros((1, n_embd), jnp.float32),
            wfc=(std * jax.random.normal(k2, (n_embd, 4 * n_embd), jnp.float32)).astype(wdt),
            bfc=jnp.zeros((1, 4 * n_embd), jnp.float32),
            wmp=(proj_std * jax.random.normal(k3, (4 * n_embd, n_embd), jnp.float32)).astype(wdt),
            bmp=jnp.zeros((1, n_embd), jnp.float32),
        ))
    key, klm = jax.random.split(key)
    # pad lm_head weight to a 128 multiple ONCE here (not per forward call)
    v_pad = _round_up(vocab_size, 128)
    wlm = (std * jax.random.normal(klm, (n_embd, vocab_size), jnp.float32)).astype(wdt)
    if v_pad != vocab_size:
        wlm = jnp.pad(wlm, ((0, 0), (0, v_pad - vocab_size)))
    return dict(
        blocks=blocks,
        lnf_w=jnp.ones((1, n_embd), jnp.float32),
        lnf_b=jnp.zeros((1, n_embd), jnp.float32),
        wlm=wlm,
        vocab_size=vocab_size,
    )


# -------------------------------- main -------------------------------------

if __name__ == "__main__":
    # small config
    B, T = 2, 8
    n_embd, n_head, n_layer = 32, 4, 2
    vocab_size, block_size = 64, 16

    key = jax.random.PRNGKey(0)
    key, kx, kp = jax.random.split(key, 3)
    tok_emb = jax.random.normal(kx, (B, T, n_embd), jnp.float32)
    params = init_params(kp, n_layer, n_embd, vocab_size)

    x_out, logits, loss = gpt_forward(tok_emb, params, n_head, block_size)
    jax.block_until_ready((x_out, logits))

    assert x_out.shape == (B, T, n_embd)
    assert logits.shape == (B, T, vocab_size)
    assert x_out.dtype == jnp.float32 and logits.dtype == jnp.float32
    assert bool(jnp.all(jnp.isfinite(x_out))) and bool(jnp.all(jnp.isfinite(logits)))
    assert loss is None
    print("KERNEL_OK")
</pallas_src>

<mosaic_0001>
module attributes {stable_mosaic.version = 11 : i64} {
  func.func @attn_kernel(%arg0: i32, %arg1: memref<1x8x32xf32, #tpu.memory_space<vmem>>, %arg2: memref<1x32xf32, #tpu.memory_space<vmem>>, %arg3: memref<1x32xf32, #tpu.memory_space<vmem>>, %arg4: memref<32x96xbf16, #tpu.memory_space<vmem>>, %arg5: memref<1x96xf32, #tpu.memory_space<vmem>>, %arg6: memref<32x32xbf16, #tpu.memory_space<vmem>>, %arg7: memref<1x32xf32, #tpu.memory_space<vmem>>, %arg8: memref<1x8x32xf32, #tpu.memory_space<vmem>>, %arg9: memref<8x96xbf16, #tpu.memory_space<vmem>>, %arg10: memref<8x32xbf16, #tpu.memory_space<vmem>>) attributes {dimension_semantics = [#tpu.dimension_semantics<parallel>], iteration_bounds = array<i64: 2>, scalar_prefetch = 0 : i64, scratch_operands = 2 : i64, tpu.core_type = #tpu.core_type<tc>, window_params = [{transform_indices = @transform_0, window_bounds = array<i64: 1, 8, 32>}, {pipeline_mode = #tpu.pipeline_mode<synchronous>, transform_indices = @transform_1, window_bounds = array<i64: 1, 32>}, {pipeline_mode = #tpu.pipeline_mode<synchronous>, transform_indices = @transform_2, window_bounds = array<i64: 1, 32>}, {pipeline_mode = #tpu.pipeline_mode<synchronous>, transform_indices = @transform_3, window_bounds = array<i64: 32, 96>}, {pipeline_mode = #tpu.pipeline_mode<synchronous>, transform_indices = @transform_4, window_bounds = array<i64: 1, 96>}, {pipeline_mode = #tpu.pipeline_mode<synchronous>, transform_indices = @transform_5, window_bounds = array<i64: 32, 32>}, {pipeline_mode = #tpu.pipeline_mode<synchronous>, transform_indices = @transform_6, window_bounds = array<i64: 1, 32>}, {transform_indices = @transform_7, window_bounds = array<i64: 1, 8, 32>}]} {
    %c0 = arith.constant 0 : index
    %c0_0 = arith.constant 0 : index
    %c0_1 = arith.constant 0 : index
    %0 = vector.load %arg1[%c0, %c0_0, %c0_1] : memref<1x8x32xf32, #tpu.memory_space<vmem>>, vector<1x8x32xf32>
    %1 = vector.shape_cast %0 : vector<1x8x32xf32> to vector<8x32xf32>
    %c0_2 = arith.constant 0 : index
    %c0_3 = arith.constant 0 : index
    %2 = vector.load %arg2[%c0_2, %c0_3] : memref<1x32xf32, #tpu.memory_space<vmem>>, vector<1x32xf32>
    %c0_4 = arith.constant 0 : index
    %c0_5 = arith.constant 0 : index
    %3 = vector.load %arg3[%c0_4, %c0_5] : memref<1x32xf32, #tpu.memory_space<vmem>>, vector<1x32xf32>
    %cst = arith.constant dense<0.000000e+00> : vector<8xf32>
    %4 = vector.multi_reduction <add>, %1, %cst [1] : vector<8x32xf32> to vector<8xf32>
    %5 = vector.shape_cast %4 : vector<8xf32> to vector<8x1xf32>
    %cst_6 = arith.constant 3.200000e+01 : f32
    %6 = vector.broadcast %cst_6 : f32 to vector<8x1xf32>
    %7 = arith.divf %5, %6 : vector<8x1xf32>
    %8 = vector.broadcast %7 : vector<8x1xf32> to vector<8x32xf32>
    %9 = arith.subf %1, %8 : vector<8x32xf32>
    %10 = arith.mulf %9, %9 : vector<8x32xf32>
    %cst_7 = arith.constant dense<0.000000e+00> : vector<8xf32>
    %11 = vector.multi_reduction <add>, %10, %cst_7 [1] : vector<8x32xf32> to vector<8xf32>
    %12 = vector.shape_cast %11 : vector<8xf32> to vector<8x1xf32>
    %cst_8 = arith.constant 3.200000e+01 : f32
    %13 = vector.broadcast %cst_8 : f32 to vector<8x1xf32>
    %14 = arith.divf %12, %13 : vector<8x1xf32>
    %15 = vector.broadcast %7 : vector<8x1xf32> to vector<8x32xf32>
    %16 = arith.subf %1, %15 : vector<8x32xf32>
    %cst_9 = arith.constant 9.99999974E-6 : f32
    %17 = vector.broadcast %cst_9 : f32 to vector<8x1xf32>
    %18 = arith.addf %14, %17 : vector<8x1xf32>
    %19 = math.rsqrt %18 : vector<8x1xf32>
    %20 = vector.broadcast %19 : vector<8x1xf32> to vector<8x32xf32>
    %21 = arith.mulf %16, %20 : vector<8x32xf32>
    %22 = vector.broadcast %2 : vector<1x32xf32> to vector<8x32xf32>
    %23 = arith.mulf %21, %22 : vector<8x32xf32>
    %24 = vector.broadcast %3 : vector<1x32xf32> to vector<8x32xf32>
    %25 = arith.addf %23, %24 : vector<8x32xf32>
    %26 = arith.truncf %25 : vector<8x32xf32> to vector<8x32xbf16>
    %c0_10 = arith.constant 0 : index
    %c0_11 = arith.constant 0 : index
    %27 = vector.load %arg4[%c0_10, %c0_11] : memref<32x96xbf16, #tpu.memory_space<vmem>>, vector<32x96xbf16>
    %cst_12 = arith.constant dense<0.000000e+00> : vector<8x96xf32>
    %28 = tpu.matmul %26, %27, %cst_12 {dimension_numbers = #tpu.dot_dimension_numbers<[1], [0], [0], [1], [0, 0, 1, 1], [], []>} : vector<8x32xbf16>, vector<32x96xbf16>, vector<8x96xf32> -> vector<8x96xf32>
    %c0_13 = arith.constant 0 : index
    %c0_14 = arith.constant 0 : index
    %29 = vector.load %arg5[%c0_13, %c0_14] : memref<1x96xf32, #tpu.memory_space<vmem>>, vector<1x96xf32>
    %30 = vector.broadcast %29 : vector<1x96xf32> to vector<8x96xf32>
    %31 = arith.addf %28, %30 : vector<8x96xf32>
    %32 = arith.truncf %31 : vector<8x96xf32> to vector<8x96xbf16>
    %c0_15 = arith.constant 0 : index
    %c0_16 = arith.constant 0 : index
    %33 = vector.load %arg9[%c0_15, %c0_16] : memref<8x96xbf16, #tpu.memory_space<vmem>>, vector<8x96xbf16>
    tpu.vector_store %arg9[%c0_15, %c0_16], %32 {strides = array<i32>} : memref<8x96xbf16, #tpu.memory_space<vmem>>, vector<8x96xbf16>,
    %34 = tpu.iota {dimensions = array<i32: 0>} : vector<8x8xi32>
    %35 = tpu.iota {dimensions = array<i32: 1>} : vector<8x8xi32>
    %36 = arith.cmpi sle, %35, %34 : vector<8x8xi32>
    %c0_17 = arith.constant 0 : index
    %c0_18 = arith.constant 0 : index
    %37 = vector.load %arg9[%c0_17, %c0_18] : memref<8x96xbf16, #tpu.memory_space<vmem>>, vector<8x8xbf16>
    %cst_19 = arith.constant 3.535160e-01 : bf16
    %38 = vector.broadcast %cst_19 : bf16 to vector<8x8xbf16>
    %39 = arith.mulf %37, %38 : vector<8x8xbf16>
    %c0_20 = arith.constant 0 : index
    %c32 = arith.constant 32 : index
    %40 = vector.load %arg9[%c0_20, %c32] : memref<8x96xbf16, #tpu.memory_space<vmem>>, vector<8x8xbf16>
    %c0_21 = arith.constant 0 : index
    %c64 = arith.constant 64 : index
    %41 = vector.load %arg9[%c0_21, %c64] : memref<8x96xbf16, #tpu.memory_space<vmem>>, vector<8x8xbf16>
    %cst_22 = arith.constant dense<0.000000e+00> : vector<8x8xf32>
    %42 = tpu.matmul %39, %40, %cst_22 {dimension_numbers = #tpu.dot_dimension_numbers<[1], [1], [0], [0], [0, 0, 1, 0], [], []>} : vector<8x8xbf16>, vector<8x8xbf16>, vector<8x8xf32> -> vector<8x8xf32>
    %cst_23 = arith.constant 0xFF800000 : f32
    %43 = vector.broadcast %cst_23 : f32 to vector<8x8xf32>
    %44 = arith.select %36, %42, %43 : vector<8x8xi1>, vector<8x8xf32>
    %cst_24 = arith.constant dense<0xFF800000> : vector<8xf32>
    %45 = vector.multi_reduction <maximumf>, %44, %cst_24 [1] : vector<8x8xf32> to vector<8xf32>
    %46 = vector.shape_cast %45 : vector<8xf32> to vector<8x1xf32>
    %47 = vector.broadcast %46 : vector<8x1xf32> to vector<8x8xf32>
    %48 = arith.subf %44, %47 : vector<8x8xf32>
    %49 = math.exp %48 : vector<8x8xf32>
    %cst_25 = arith.constant dense<0.000000e+00> : vector<8xf32>
    %50 = vector.multi_reduction <add>, %49, %cst_25 [1] : vector<8x8xf32> to vector<8xf32>
    %51 = vector.shape_cast %50 : vector<8xf32> to vector<8x1xf32>
    %52 = arith.truncf %49 : vector<8x8xf32> to vector<8x8xbf16>
    %cst_26 = arith.constant dense<0.000000e+00> : vector<8x8xf32>
    %53 = tpu.matmul %52, %41, %cst_26 {dimension_numbers = #tpu.dot_dimension_numbers<[1], [0], [0], [1], [0, 0, 1, 1], [], []>} : vector<8x8xbf16>, vector<8x8xbf16>, vector<8x8xf32> -> vector<8x8xf32>
    %54 = tpu.reciprocal %51 {approx = true} : vector<8x1xf32> -> vector<8x1xf32>
    %55 = vector.broadcast %54 : vector<8x1xf32> to vector<8x8xf32>
    %56 = arith.mulf %53, %55 : vector<8x8xf32>
    %57 = arith.truncf %56 : vector<8x8xf32> to vector<8x8xbf16>
    %c0_27 = arith.constant 0 : index
    %c0_28 = arith.constant 0 : index
    %58 = vector.load %arg10[%c0_27, %c0_28] : memref<8x32xbf16, #tpu.memory_space<vmem>>, vector<8x8xbf16>
    tpu.vector_store %arg10[%c0_27, %c0_28], %57 {strides = array<i32>} : memref<8x32xbf16, #tpu.memory_space<vmem>>, vector<8x8xbf16>,
    %c0_29 = arith.constant 0 : index
    %c8 = arith.constant 8 : index
    %59 = vector.load %arg9[%c0_29, %c8] : memref<8x96xbf16, #tpu.memory_space<vmem>>, vector<8x8xbf16>
    %cst_30 = arith.constant 3.535160e-01 : bf16
    %60 = vector.broadcast %cst_30 : bf16 to vector<8x8xbf16>
    %61 = arith.mulf %59, %60 : vector<8x8xbf16>
    %c0_31 = arith.constant 0 : index
    %c40 = arith.constant 40 : index
    %62 = vector.load %arg9[%c0_31, %c40] : memref<8x96xbf16, #tpu.memory_space<vmem>>, vector<8x8xbf16>
    %c0_32 = arith.constant 0 : index
    %c72 = arith.constant 72 : index
    %63 = vector.load %arg9[%c0_32, %c72] : memref<8x96xbf16, #tpu.memory_space<vmem>>, vector<8x8xbf16>
    %cst_33 = arith.constant dense<0.000000e+00> : vector<8x8xf32>
    %64 = tpu.matmul %61, %62, %cst_33 {dimension_numbers = #tpu.dot_dimension_numbers<[1], [1], [0], [0], [0, 0, 1, 0], [], []>} : vector<8x8xbf16>, vector<8x8xbf16>, vector<8x8xf32> -> vector<8x8xf32>
    %cst_34 = arith.constant 0xFF800000 : f32
    %65 = vector.broadcast %cst_34 : f32 to vector<8x8xf32>
    %66 = arith.select %36, %64, %65 : vector<8x8xi1>, vector<8x8xf32>
    %cst_35 = arith.constant dense<0xFF800000> : vector<8xf32>
    %67 = vector.multi_reduction <maximumf>, %66, %cst_35 [1] : vector<8x8xf32> to vector<8xf32>
    %68 = vector.shape_cast %67 : vector<8xf32> to vector<8x1xf32>
    %69 = vector.broadcast %68 : vector<8x1xf32> to vector<8x8xf32>
    %70 = arith.subf %66, %69 : vector<8x8xf32>
    %71 = math.exp %70 : vector<8x8xf32>
    %cst_36 = arith.constant dense<0.000000e+00> : vector<8xf32>
    %72 = vector.multi_reduction <add>, %71, %cst_36 [1] : vector<8x8xf32> to vector<8xf32>
    %73 = vector.shape_cast %72 : vector<8xf32> to vector<8x1xf32>
    %74 = arith.truncf %71 : vector<8x8xf32> to vector<8x8xbf16>
    %cst_37 = arith.constant dense<0.000000e+00> : vector<8x8xf32>
    %75 = tpu.matmul %74, %63, %cst_37 {dimension_numbers = #tpu.dot_dimension_numbers<[1], [0], [0], [1], [0, 0, 1, 1], [], []>} : vector<8x8xbf16>, vector<8x8xbf16>, vector<8x8xf32> -> vector<8x8xf32>
    %76 = tpu.reciprocal %73 {approx = true} : vector<8x1xf32> -> vector<8x1xf32>
    %77 = vector.broadcast %76 : vector<8x1xf32> to vector<8x8xf32>
    %78 = arith.mulf %75, %77 : vector<8x8xf32>
    %79 = arith.truncf %78 : vector<8x8xf32> to vector<8x8xbf16>
    %c0_38 = arith.constant 0 : index
    %c8_39 = arith.constant 8 : index
    %80 = vector.load %arg10[%c0_38, %c8_39] : memref<8x32xbf16, #tpu.memory_space<vmem>>, vector<8x8xbf16>
    tpu.vector_store %arg10[%c0_38, %c8_39], %79 {strides = array<i32>} : memref<8x32xbf16, #tpu.memory_space<vmem>>, vector<8x8xbf16>,
    %c0_40 = arith.constant 0 : index
    %c16 = arith.constant 16 : index
    %81 = vector.load %arg9[%c0_40, %c16] : memref<8x96xbf16, #tpu.memory_space<vmem>>, vector<8x8xbf16>
    %cst_41 = arith.constant 3.535160e-01 : bf16
    %82 = vector.broadcast %cst_41 : bf16 to vector<8x8xbf16>
    %83 = arith.mulf %81, %82 : vector<8x8xbf16>
    %c0_42 = arith.constant 0 : index
    %c48 = arith.constant 48 : index
    %84 = vector.load %arg9[%c0_42, %c48] : memref<8x96xbf16, #tpu.memory_space<vmem>>, vector<8x8xbf16>
    %c0_43 = arith.constant 0 : index
    %c80 = arith.constant 80 : index
    %85 = vector.load %arg9[%c0_43, %c80] : memref<8x96xbf16, #tpu.memory_space<vmem>>, vector<8x8xbf16>
    %cst_44 = arith.constant dense<0.000000e+00> : vector<8x8xf32>
    %86 = tpu.matmul %83, %84, %cst_44 {dimension_numbers = #tpu.dot_dimension_numbers<[1], [1], [0], [0], [0, 0, 1, 0], [], []>} : vector<8x8xbf16>, vector<8x8xbf16>, vector<8x8xf32> -> vector<8x8xf32>
    %cst_45 = arith.constant 0xFF800000 : f32
    %87 = vector.broadcast %cst_45 : f32 to vector<8x8xf32>
    %88 = arith.select %36, %86, %87 : vector<8x8xi1>, vector<8x8xf32>
    %cst_46 = arith.constant dense<0xFF800000> : vector<8xf32>
    %89 = vector.multi_reduction <maximumf>, %88, %cst_46 [1] : vector<8x8xf32> to vector<8xf32>
    %90 = vector.shape_cast %89 : vector<8xf32> to vector<8x1xf32>
    %91 = vector.broadcast %90 : vector<8x1xf32> to vector<8x8xf32>
    %92 = arith.subf %88, %91 : vector<8x8xf32>
    %93 = math.exp %92 : vector<8x8xf32>
    %cst_47 = arith.constant dense<0.000000e+00> : vector<8xf32>
    %94 = vector.multi_reduction <add>, %93, %cst_47 [1] : vector<8x8xf32> to vector<8xf32>
    %95 = vector.shape_cast %94 : vector<8xf32> to vector<8x1xf32>
    %96 = arith.truncf %93 : vector<8x8xf32> to vector<8x8xbf16>
    %cst_48 = arith.constant dense<0.000000e+00> : vector<8x8xf32>
    %97 = tpu.matmul %96, %85, %cst_48 {dimension_numbers = #tpu.dot_dimension_numbers<[1], [0], [0], [1], [0, 0, 1, 1], [], []>} : vector<8x8xbf16>, vector<8x8xbf16>, vector<8x8xf32> -> vector<8x8xf32>
    %98 = tpu.reciprocal %95 {approx = true} : vector<8x1xf32> -> vector<8x1xf32>
    %99 = vector.broadcast %98 : vector<8x1xf32> to vector<8x8xf32>
    %100 = arith.mulf %97, %99 : vector<8x8xf32>
    %101 = arith.truncf %100 : vector<8x8xf32> to vector<8x8xbf16>
    %c0_49 = arith.constant 0 : index
    %c16_50 = arith.constant 16 : index
    %102 = vector.load %arg10[%c0_49, %c16_50] : memref<8x32xbf16, #tpu.memory_space<vmem>>, vector<8x8xbf16>
    tpu.vector_store %arg10[%c0_49, %c16_50], %101 {strides = array<i32>} : memref<8x32xbf16, #tpu.memory_space<vmem>>, vector<8x8xbf16>,
    %c0_51 = arith.constant 0 : index
    %c24 = arith.constant 24 : index
    %103 = vector.load %arg9[%c0_51, %c24] : memref<8x96xbf16, #tpu.memory_space<vmem>>, vector<8x8xbf16>
    %cst_52 = arith.constant 3.535160e-01 : bf16
    %104 = vector.broadcast %cst_52 : bf16 to vector<8x8xbf16>
    %105 = arith.mulf %103, %104 : vector<8x8xbf16>
    %c0_53 = arith.constant 0 : index
    %c56 = arith.constant 56 : index
    %106 = vector.load %arg9[%c0_53, %c56] : memref<8x96xbf16, #tpu.memory_space<vmem>>, vector<8x8xbf16>
    %c0_54 = arith.constant 0 : index
    %c88 = arith.constant 88 : index
    %107 = vector.load %arg9[%c0_54, %c88] : memref<8x96xbf16, #tpu.memory_space<vmem>>, vector<8x8xbf16>
    %cst_55 = arith.constant dense<0.000000e+00> : vector<8x8xf32>
    %108 = tpu.matmul %105, %106, %cst_55 {dimension_numbers = #tpu.dot_dimension_numbers<[1], [1], [0], [0], [0, 0, 1, 0], [], []>} : vector<8x8xbf16>, vector<8x8xbf16>, vector<8x8xf32> -> vector<8x8xf32>
    %cst_56 = arith.constant 0xFF800000 : f32
    %109 = vector.broadcast %cst_56 : f32 to vector<8x8xf32>
    %110 = arith.select %36, %108, %109 : vector<8x8xi1>, vector<8x8xf32>
    %cst_57 = arith.constant dense<0xFF800000> : vector<8xf32>
    %111 = vector.multi_reduction <maximumf>, %110, %cst_57 [1] : vector<8x8xf32> to vector<8xf32>
    %112 = vector.shape_cast %111 : vector<8xf32> to vector<8x1xf32>
    %113 = vector.broadcast %112 : vector<8x1xf32> to vector<8x8xf32>
    %114 = arith.subf %110, %113 : vector<8x8xf32>
    %115 = math.exp %114 : vector<8x8xf32>
    %cst_58 = arith.constant dense<0.000000e+00> : vector<8xf32>
    %116 = vector.multi_reduction <add>, %115, %cst_58 [1] : vector<8x8xf32> to vector<8xf32>
    %117 = vector.shape_cast %116 : vector<8xf32> to vector<8x1xf32>
    %118 = arith.truncf %115 : vector<8x8xf32> to vector<8x8xbf16>
    %cst_59 = arith.constant dense<0.000000e+00> : vector<8x8xf32>
    %119 = tpu.matmul %118, %107, %cst_59 {dimension_numbers = #tpu.dot_dimension_numbers<[1], [0], [0], [1], [0, 0, 1, 1], [], []>} : vector<8x8xbf16>, vector<8x8xbf16>, vector<8x8xf32> -> vector<8x8xf32>
    %120 = tpu.reciprocal %117 {approx = true} : vector<8x1xf32> -> vector<8x1xf32>
    %121 = vector.broadcast %120 : vector<8x1xf32> to vector<8x8xf32>
    %122 = arith.mulf %119, %121 : vector<8x8xf32>
    %123 = arith.truncf %122 : vector<8x8xf32> to vector<8x8xbf16>
    %c0_60 = arith.constant 0 : index
    %c24_61 = arith.constant 24 : index
    %124 = vector.load %arg10[%c0_60, %c24_61] : memref<8x32xbf16, #tpu.memory_space<vmem>>, vector<8x8xbf16>
    tpu.vector_store %arg10[%c0_60, %c24_61], %123 {strides = array<i32>} : memref<8x32xbf16, #tpu.memory_space<vmem>>, vector<8x8xbf16>,
    %c0_62 = arith.constant 0 : index
    %c0_63 = arith.constant 0 : index
    %125 = vector.load %arg10[%c0_62, %c0_63] : memref<8x32xbf16, #tpu.memory_space<vmem>>, vector<8x32xbf16>
    %c0_64 = arith.constant 0 : index
    %c0_65 = arith.constant 0 : index
    %126 = vector.load %arg6[%c0_64, %c0_65] : memref<32x32xbf16, #tpu.memory_space<vmem>>, vector<32x32xbf16>
    %cst_66 = arith.constant dense<0.000000e+00> : vector<8x32xf32>
    %127 = tpu.matmul %125, %126, %cst_66 {dimension_numbers = #tpu.dot_dimension_numbers<[1], [0], [0], [1], [0, 0, 1, 1], [], []>} : vector<8x32xbf16>, vector<32x32xbf16>, vector<8x32xf32> -> vector<8x32xf32>
    %128 = arith.addf %1, %127 : vector<8x32xf32>
    %c0_67 = arith.constant 0 : index
    %c0_68 = arith.constant 0 : index
    %129 = vector.load %arg7[%c0_67, %c0_68] : memref<1x32xf32, #tpu.memory_space<vmem>>, vector<1x32xf32>
    %130 = vector.broadcast %129 : vector<1x32xf32> to vector<8x32xf32>
    %131 = arith.addf %128, %130 : vector<8x32xf32>
    %c0_69 = arith.constant 0 : index
    %c0_70 = arith.constant 0 : index
    %c0_71 = arith.constant 0 : index
    %132 = vector.load %arg8[%c0_69, %c0_70, %c0_71] : memref<1x8x32xf32, #tpu.memory_space<vmem>>, vector<1x8x32xf32>
    %133 = vector.shape_cast %132 : vector<1x8x32xf32> to vector<8x32xf32>
    %134 = vector.shape_cast %131 : vector<8x32xf32> to vector<1x8x32xf32>
    tpu.vector_store %arg8[%c0_69, %c0_70, %c0_71], %134 {strides = array<i32>} : memref<1x8x32xf32, #tpu.memory_space<vmem>>, vector<1x8x32xf32>,
    return
  }
  func.func @transform_0(%arg0: i32) -> (i32, i32, i32) {
    %c0_i32 = arith.constant 0 : i32
    %c0_i32_0 = arith.constant 0 : i32
    %c0_i32_1 = arith.constant 0 : i32
    return %arg0, %c0_i32, %c0_i32_0 : i32, i32, i32
  }
  func.func @transform_1(%arg0: i32) -> (i32, i32) {
    %c0_i32 = arith.constant 0 : i32
    %c0_i32_0 = arith.constant 0 : i32
    %c0_i32_1 = arith.constant 0 : i32
    return %c0_i32, %c0_i32_0 : i32, i32
  }
  func.func @transform_2(%arg0: i32) -> (i32, i32) {
    %c0_i32 = arith.constant 0 : i32
    %c0_i32_0 = arith.constant 0 : i32
    %c0_i32_1 = arith.constant 0 : i32
    return %c0_i32, %c0_i32_0 : i32, i32
  }
  func.func @transform_3(%arg0: i32) -> (i32, i32) {
    %c0_i32 = arith.constant 0 : i32
    %c0_i32_0 = arith.constant 0 : i32
    %c0_i32_1 = arith.constant 0 : i32
    return %c0_i32, %c0_i32_0 : i32, i32
  }
  func.func @transform_4(%arg0: i32) -> (i32, i32) {
    %c0_i32 = arith.constant 0 : i32
    %c0_i32_0 = arith.constant 0 : i32
    %c0_i32_1 = arith.constant 0 : i32
    return %c0_i32, %c0_i32_0 : i32, i32
  }
  func.func @transform_5(%arg0: i32) -> (i32, i32) {
    %c0_i32 = arith.constant 0 : i32
    %c0_i32_0 = arith.constant 0 : i32
    %c0_i32_1 = arith.constant 0 : i32
    return %c0_i32, %c0_i32_0 : i32, i32
  }
  func.func @transform_6(%arg0: i32) -> (i32, i32) {
    %c0_i32 = arith.constant 0 : i32
    %c0_i32_0 = arith.constant 0 : i32
    %c0_i32_1 = arith.constant 0 : i32
    return %c0_i32, %c0_i32_0 : i32, i32
  }
  func.func @transform_7(%arg0: i32) -> (i32, i32, i32) {
    %c0_i32 = arith.constant 0 : i32
    %c0_i32_0 = arith.constant 0 : i32
    %c0_i32_1 = arith.constant 0 : i32
    return %arg0, %c0_i32, %c0_i32_0 : i32, i32, i32
  }
}

</mosaic_0001>

<llo_original>
// kernel: tpu_custom_call.1
$region0: #{tpu_custom_call.1}
  #allocation0 [shape = 'u32[]', space=smem, size = 0x4, offset = 0x4, fixed_abs, tag = 'smem constant byte address 0x4 - core index']
  #allocation1 [shape = 'u32[144,128]{1,0:T(1,128)}', space=vmem, size = 0x12000, scoped, tag = 'internal scratch']
  #allocation2 [shape = 'bf16[8,96]{1,0:T(8,128)(2,1)}', space=vmem, size = 0x800, scoped, tag = 'scratch operand']
  #allocation3 [shape = 'bf16[8,32]{1,0:T(8,128)(2,1)}', space=vmem, size = 0x800, scoped, tag = 'scratch operand']
  %s0 = inlined_call_operand.hbm [shape: f32[2,8,32], index: 0, kind: input, shape index: {}]
  %s1 = inlined_call_operand.vmem [shape: f32[1,32], index: 1, kind: input, shape index: {}]
  %s2 = inlined_call_operand.vmem [shape: f32[1,32], index: 2, kind: input, shape index: {}]
  %s3 = inlined_call_operand.hbm [shape: bf16[32,96], index: 3, kind: input, shape index: {}]
  %s4 = inlined_call_operand.vmem [shape: f32[1,96], index: 4, kind: input, shape index: {}]
  %s5 = inlined_call_operand.hbm [shape: bf16[32,32], index: 5, kind: input, shape index: {}]
  %s6 = inlined_call_operand.vmem [shape: f32[1,32], index: 6, kind: input, shape index: {}]
  %s7 = inlined_call_operand.hbm [shape: f32[2,8,32], index: 7, kind: output, shape index: {}]
  %s8 = sld [smem:[#allocation0]]
  $region73: #{tpu_custom_call.1} parent=0
    _
  %s10 = ssub.s32 1, %s8
  %s11 = scalar_select 0, %s10, %s8
  $region1: #{tpu_custom_call.1} parent=0
    #allocation4 [shape = 'u8[8192]{0}', space=vmem, size = 0x2000, scoped, tag = 'input window, operand 0']
    #allocation5 [shape = 's32[2]{0}', space=sflag, size = 0x8, scoped, tag = 'scoped memory for tpu_custom_call.1']
    #allocation6 [shape = 's32[2]{0}', space=sflag, size = 0x8, scoped, tag = 'scoped memory for tpu_custom_call.1']
    #allocation7 [shape = 'u8[8192]{0}', space=vmem, size = 0x2000, scoped, tag = 'input window, operand 3, single buffered']
    #allocation8 [shape = 's32[1]{0}', space=sflag, size = 0x4, scoped, tag = 'scoped memory for tpu_custom_call.1']
    #allocation9 [shape = 'u8[8192]{0}', space=vmem, size = 0x2000, scoped, tag = 'input window, operand 5, single buffered']
    #allocation10 [shape = 'u8[8192]{0}', space=vmem, size = 0x2000, scoped, tag = 'output window, operand 0']
    %12 = vsyncpa [#allocation5], 0
    %s13 = scalar_lea.sflag [#allocation5], 1
    %14 = vsyncpa %s13, 0
    %15 = vsyncpa [#allocation8], 0
    %16 = vsyncpa [#allocation6], 0
    %s17 = scalar_lea.sflag [#allocation6], 1
    %18 = vsyncpa %s17, 0
    loop: start=0, step=1, limit=4
    $region2: #{tpu_custom_call.1} parent=1 // loop_pre_header
      _
    $region3: #{tpu_custom_call.1} parent=1 // loop_header
      %s20 = sphi 0, %s24
      %p21 = scmp.ge.s32.totalorder %s20, 4
      %s30 = sphi 0, %s32
      %s33 = sphi 0, %s30
      %s34 = sphi 0, %s33
      %s50 = sphi 0, %s34
      %s54 = sphi 0, %s54
      %s56 = sphi 0, %s54
      %s57 = sphi 0, %s56
      %s71 = sphi 0, %s57
      %s75 = sphi 0, %s75
      %s77 = sphi 0, %s75
      %s78 = sphi 0, %s77
      %s92 = sphi 0, %s78
      %s96 = sphi 0, %s96
      %s98 = sphi 0, %s96
      %s99 = sphi 0, %s98
      %s113 = sphi 0, %s99
      %s117 = sphi 0, %s117
      %s119 = sphi 0, %s117
      %s120 = sphi 0, %s119
      %s134 = sphi 0, %s120
      %s138 = sphi 0, %s138
      %s140 = sphi 0, %s138
      %s141 = sphi 0, %s140
      %s155 = sphi 0, %s141
      %s159 = sphi 0, %s159
      %s161 = sphi 0, %s159
      %s162 = sphi 0, %s161
      %s176 = sphi 0, %s162
      %s182 = sphi 0, %s184
      %s185 = sphi 0, %s182
      %s186 = sphi 0, %s185
      %s202 = sphi 0, %s186
    $region4: #{tpu_custom_call.1} parent=1 // loop_header_branch
      %23 = sbr.rel (%p21) target = $region8
    $region5: #{tpu_custom_call.1} parent=1 // loop_body
      %s25 = ssub.s32 %s20, 1
      %s26 = ssub.s32 %s20, 2
      %s27 = sadd.s32 %s20, 1
      %s28 = ssub.s32 %s20, %s27
      %p29 = scmp.eq.s32.totalorder %s28, 0
      %s31 = sadd.s32 %s30, 1
      %s32 = scalar_select %p29, %s30, %s31
      %p35 = pneg %p29
      %p36 = scmp.eq.s32.totalorder %s20, 1
      %p37 = por %p35, %p36
      %p38 = scmp.ne.s32.totalorder %s30, %s33
      %p39 = scmp.eq.s32.totalorder %s20, 0
      %p40 = por %p38, %p39
      %p41 = scmp.ne.s32.totalorder %s30, %s33
      %p42 = scmp.eq.s32.totalorder %s25, 1
      %p43 = por %p41, %p42
      %p44 = scmp.ne.s32.totalorder %s33, %s34
      %p45 = scmp.eq.s32.totalorder %s25, 0
      %p46 = por %p44, %p45
      %p47 = scmp.ne.s32.totalorder %s33, %s34
      %p48 = scmp.eq.s32.totalorder %s26, 1
      %p49 = por %p47, %p48
      %p51 = scmp.ne.s32.totalorder %s34, %s50
      %p52 = scmp.eq.s32.totalorder %s26, 0
      %p53 = por %p51, %p52
      %s55 = sadd.s32 %s54, 1
      %p58 = scmp.eq.s32.totalorder %s20, 1
      %p59 = scmp.ne.s32.totalorder %s54, %s56
      %p60 = scmp.eq.s32.totalorder %s20, 0
      %p61 = por %p59, %p60
      %p62 = scmp.ne.s32.totalorder %s54, %s56
      %p63 = scmp.eq.s32.totalorder %s25, 1
      %p64 = por %p62, %p63
      %p65 = scmp.ne.s32.totalorder %s56, %s57
      %p66 = scmp.eq.s32.totalorder %s25, 0
      %p67 = por %p65, %p66
      %p68 = scmp.ne.s32.totalorder %s56, %s57
      %p69 = scmp.eq.s32.totalorder %s26, 1
      %p70 = por %p68, %p69
      %p72 = scmp.ne.s32.totalorder %s57, %s71
      %p73 = scmp.eq.s32.totalorder %s26, 0
      %p74 = por %p72, %p73
      %s76 = sadd.s32 %s75, 1
      %p79 = scmp.eq.s32.totalorder %s20, 1
      %p80 = scmp.ne.s32.totalorder %s75, %s77
      %p81 = scmp.eq.s32.totalorder %s20, 0
      %p82 = por %p80, %p81
      %p83 = scmp.ne.s32.totalorder %s75, %s77
      %p84 = scmp.eq.s32.totalorder %s25, 1
      %p85 = por %p83, %p84
      %p86 = scmp.ne.s32.totalorder %s77, %s78
      %p87 = scmp.eq.s32.totalorder %s25, 0
      %p88 = por %p86, %p87
      %p89 = scmp.ne.s32.totalorder %s77, %s78
      %p90 = scmp.eq.s32.totalorder %s26, 1
      %p91 = por %p89, %p90
      %p93 = scmp.ne.s32.totalorder %s78, %s92
      %p94 = scmp.eq.s32.totalorder %s26, 0
      %p95 = por %p93, %p94
      %s97 = sadd.s32 %s96, 1
      %p100 = scmp.eq.s32.totalorder %s20, 1
      %p101 = scmp.ne.s32.totalorder %s96, %s98
      %p102 = scmp.eq.s32.totalorder %s20, 0
      %p103 = por %p101, %p102
      %p104 = scmp.ne.s32.totalorder %s96, %s98
      %p105 = scmp.eq.s32.totalorder %s25, 1
      %p106 = por %p104, %p105
      %p107 = scmp.ne.s32.totalorder %s98, %s99
      %p108 = scmp.eq.s32.totalorder %s25, 0
      %p109 = por %p107, %p108
      %p110 = scmp.ne.s32.totalorder %s98, %s99
      %p111 = scmp.eq.s32.totalorder %s26, 1
      %p112 = por %p110, %p111
      %p114 = scmp.ne.s32.totalorder %s99, %s113
      %p115 = scmp.eq.s32.totalorder %s26, 0
      %p116 = por %p114, %p115
      %s118 = sadd.s32 %s117, 1
      %p121 = scmp.eq.s32.totalorder %s20, 1
      %p122 = scmp.ne.s32.totalorder %s117, %s119
      %p123 = scmp.eq.s32.totalorder %s20, 0
      %p124 = por %p122, %p123
      %p125 = scmp.ne.s32.totalorder %s117, %s119
      %p126 = scmp.eq.s32.totalorder %s25, 1
      %p127 = por %p125, %p126
      %p128 = scmp.ne.s32.totalorder %s119, %s120
      %p129 = scmp.eq.s32.totalorder %s25, 0
      %p130 = por %p128, %p129
      %p131 = scmp.ne.s32.totalorder %s119, %s120
      %p132 = scmp.eq.s32.totalorder %s26, 1
      %p133 = por %p131, %p132
      %p135 = scmp.ne.s32.totalorder %s120, %s134
      %p136 = scmp.eq.s32.totalorder %s26, 0
      %p137 = por %p135, %p136
      %s139 = sadd.s32 %s138, 1
      %p142 = scmp.eq.s32.totalorder %s20, 1
      %p143 = scmp.ne.s32.totalorder %s138, %s140
      %p144 = scmp.eq.s32.totalorder %s20, 0
      %p145 = por %p143, %p144
      %p146 = scmp.ne.s32.totalorder %s138, %s140
      %p147 = scmp.eq.s32.totalorder %s25, 1
      %p148 = por %p146, %p147
      %p149 = scmp.ne.s32.totalorder %s140, %s141
      %p150 = scmp.eq.s32.totalorder %s25, 0
      %p151 = por %p149, %p150
      %p152 = scmp.ne.s32.totalorder %s140, %s141
      %p153 = scmp.eq.s32.totalorder %s26, 1
      %p154 = por %p152, %p153
      %p156 = scmp.ne.s32.totalorder %s141, %s155
      %p157 = scmp.eq.s32.totalorder %s26, 0
      %p158 = por %p156, %p157
      %s160 = sadd.s32 %s159, 1
      %p163 = scmp.eq.s32.totalorder %s20, 1
      %p164 = scmp.ne.s32.totalorder %s159, %s161
      %p165 = scmp.eq.s32.totalorder %s20, 0
      %p166 = por %p164, %p165
      %p167 = scmp.ne.s32.totalorder %s159, %s161
      %p168 = scmp.eq.s32.totalorder %s25, 1
      %p169 = por %p167, %p168
      %p170 = scmp.ne.s32.totalorder %s161, %s162
      %p171 = scmp.eq.s32.totalorder %s25, 0
      %p172 = por %p170, %p171
      %p173 = scmp.ne.s32.totalorder %s161, %s162
      %p174 = scmp.eq.s32.totalorder %s26, 1
      %p175 = por %p173, %p174
      %p177 = scmp.ne.s32.totalorder %s162, %s176
      %p178 = scmp.eq.s32.totalorder %s26, 0
      %p179 = por %p177, %p178
      %s180 = ssub.s32 %s20, %s27
      %p181 = scmp.eq.s32.totalorder %s180, 0
      %s183 = sadd.s32 %s182, 1
      %s184 = scalar_select %p181, %s182, %s183
      %p187 = pneg %p181
      %p188 = scmp.eq.s32.totalorder %s20, 1
      %p189 = por %p187, %p188
      %p190 = scmp.ne.s32.totalorder %s182, %s185
      %p191 = scmp.eq.s32.totalorder %s20, 0
      %p192 = por %p190, %p191
      %p193 = scmp.ne.s32.totalorder %s182, %s185
      %p194 = scmp.eq.s32.totalorder %s25, 1
      %p195 = por %p193, %p194
      %p196 = scmp.ne.s32.totalorder %s185, %s186
      %p197 = scmp.eq.s32.totalorder %s25, 0
      %p198 = por %p196, %p197
      %p199 = scmp.ne.s32.totalorder %s185, %s186
      %p200 = scmp.eq.s32.totalorder %s26, 1
      %p201 = por %p199, %p200
      %p203 = scmp.ne.s32.totalorder %s186, %s202
      %p204 = scmp.eq.s32.totalorder %s26, 0
      %p205 = por %p203, %p204
      %p206 = scmp.le.s32.totalorder 1, %s20
      %p207 = scmp.lt.s32.totalorder %s20, 3
      %p208 = pnand %p206, %p207
      %p209 = pneg %p208
      // Predicated region
      $region9: #{tpu_custom_call.1} parent=5 // pred_check
        _
      $region10: #{tpu_custom_call.1} parent=5 // pred_check_branch
        %211 = sbr.rel (%p208) target = $region12
      $region11: #{tpu_custom_call.1} parent=5 // pred_region
        %s212 = ssub.s32 %s20, 1
        // Predicated region
        $region13: #{tpu_custom_call.1} parent=11 // pred_check
          %p213 = pneg %p67
        $region14: #{tpu_custom_call.1} parent=11 // pred_check_branch
          %215 = sbr.rel (%p213) target = $region16
        $region15: #{tpu_custom_call.1} parent=11 // pred_region
          _
        $region16: #{tpu_custom_call.1} parent=11 // pred_fallthru
          _
        // Predicated region
        $region17: #{tpu_custom_call.1} parent=11 // pred_check
          %p216 = pneg %p88
        $region18: #{tpu_custom_call.1} parent=11 // pred_check_branch
          %218 = sbr.rel (%p216) target = $region20
        $region19: #{tpu_custom_call.1} parent=11 // pred_region
          _
        $region20: #{tpu_custom_call.1} parent=11 // pred_fallthru
          _
        // Predicated region
        $region21: #{tpu_custom_call.1} parent=11 // pred_check
          %p219 = pneg %p109
        $region22: #{tpu_custom_call.1} parent=11 // pred_check_branch
          %221 = sbr.rel (%p219) target = $region24
        $region23: #{tpu_custom_call.1} parent=11 // pred_region
          %s223 = ssub.s32 256, 256
          %224 = vsyncadd [#allocation8], %s223
          %s225 = sshll.u32 [#allocation7], 4
          %s226 = int_to_ptr.vmem [resolvable:$true] %s225
          %231 = dma.hbm_to_vmem [thread:$0]  %s3, 256, %s226, [#allocation8], 64, 64, 4
        $region24: #{tpu_custom_call.1} parent=11 // pred_fallthru
          _
        // Predicated region
        $region25: #{tpu_custom_call.1} parent=11 // pred_check
          %p232 = pneg %p130
        $region26: #{tpu_custom_call.1} parent=11 // pred_check_branch
          %234 = sbr.rel (%p232) target = $region28
        $region27: #{tpu_custom_call.1} parent=11 // pred_region
          _
        $region28: #{tpu_custom_call.1} parent=11 // pred_fallthru
          _
        // Predicated region
        $region29: #{tpu_custom_call.1} parent=11 // pred_check
          %p235 = pneg %p151
        $region30: #{tpu_custom_call.1} parent=11 // pred_check_branch
          %237 = sbr.rel (%p235) target = $region32
        $region31: #{tpu_custom_call.1} parent=11 // pred_region
          %s239 = ssub.s32 256, 256
          %240 = vsyncadd [#allocation8], %s239
          %s241 = sshll.u32 [#allocation9], 4
          %s242 = int_to_ptr.vmem [resolvable:$true] %s241
          %247 = dma.hbm_to_vmem [thread:$0]  %s5, 256, %s242, [#allocation8], 64, 64, 4
        $region32: #{tpu_custom_call.1} parent=11 // pred_fallthru
          _
        // Predicated region
        $region33: #{tpu_custom_call.1} parent=11 // pred_check
          %p248 = pneg %p172
        $region34: #{tpu_custom_call.1} parent=11 // pred_check_branch
          %250 = sbr.rel (%p248) target = $region36
        $region35: #{tpu_custom_call.1} parent=11 // pred_region
          _
        $region36: #{tpu_custom_call.1} parent=11 // pred_fallthru
          _
      $region12: #{tpu_custom_call.1} parent=5 // pred_fallthru
        _
      %p251 = scmp.lt.s32.totalorder %s20, 2
      // Predicated region
      $region37: #{tpu_custom_call.1} parent=5 // pred_check
        %p252 = pneg %p251
      $region38: #{tpu_custom_call.1} parent=5 // pred_check_branch
        %254 = sbr.rel (%p252) target = $region40
      $region39: #{tpu_custom_call.1} parent=5 // pred_region
        // Predicated region
        $region41: #{tpu_custom_call.1} parent=39 // pred_check
          %p255 = pneg %p40
        $region42: #{tpu_custom_call.1} parent=39 // pred_check_branch
          %257 = sbr.rel (%p255) target = $region44
        $region43: #{tpu_custom_call.1} parent=39 // pred_region
          %s258 = sand.u32 %s30, 1
          %s259 = scalar_lea.sflag [#allocation5], %s258
          %s260 = sand.u32 %s30, 1
          %s261 = smul.addr %s260, 8
          %s262 = scalar_lea.vmem [#allocation4], %s261
          %s264 = ssub.s32 128, 128
          %265 = vsyncadd %s259, %s264
          %s266 = smul.addr %s20, 128
          %s267 = scalar_lea.hbm %s0, %s266
          %s269 = sshll.u32 %s262, 4
          %s270 = int_to_ptr.vmem [resolvable:$true] %s269
          %272 = dma.hbm_to_vmem [thread:$0]  %s267, 128, %s270, %s259
        $region44: #{tpu_custom_call.1} parent=39 // pred_fallthru
          _
      $region40: #{tpu_custom_call.1} parent=5 // pred_fallthru
        _
      %p273 = scmp.le.s32.totalorder 1, %s20
      %p274 = scmp.lt.s32.totalorder %s20, 3
      %p275 = pnand %p273, %p274
      %p276 = pneg %p275
      // Predicated region
      $region45: #{tpu_custom_call.1} parent=5 // pred_check
        _
      $region46: #{tpu_custom_call.1} parent=5 // pred_check_branch
        %278 = sbr.rel (%p275) target = $region48
      $region47: #{tpu_custom_call.1} parent=5 // pred_region
        %s279 = ssub.s32 %s20, 1
        %s280 = sand.u32 %s33, 1
        %s281 = scalar_lea.sflag [#allocation5], %s280
        %s282 = sand.u32 %s33, 1
        %s283 = smul.addr %s282, 8
        %s284 = scalar_lea.vmem [#allocation4], %s283
        // Predicated region
        $region49: #{tpu_custom_call.1} parent=47 // pred_check
          %p285 = pneg %p46
        $region50: #{tpu_custom_call.1} parent=47 // pred_check_branch
          %287 = sbr.rel (%p285) target = $region52
        $region51: #{tpu_custom_call.1} parent=47 // pred_region
          %288 = dma.done %s281, 128
        $region52: #{tpu_custom_call.1} parent=47 // pred_fallthru
          _
        // Predicated region
        $region53: #{tpu_custom_call.1} parent=47 // pred_check
          %p289 = pneg %p109
        $region54: #{tpu_custom_call.1} parent=47 // pred_check_branch
          %291 = sbr.rel (%p289) target = $region56
        $region55: #{tpu_custom_call.1} parent=47 // pred_region
          %292 = dma.done [#allocation8], 256
        $region56: #{tpu_custom_call.1} parent=47 // pred_fallthru
          _
        // Predicated region
        $region57: #{tpu_custom_call.1} parent=47 // pred_check
          %p293 = pneg %p151
        $region58: #{tpu_custom_call.1} parent=47 // pred_check_branch
          %295 = sbr.rel (%p293) target = $region60
        $region59: #{tpu_custom_call.1} parent=47 // pred_region
          %296 = dma.done [#allocation8], 256
        $region60: #{tpu_custom_call.1} parent=47 // pred_fallthru
          _
        %s297 = sand.u32 %s33, 1
        %s298 = scalar_lea.sflag [#allocation5], %s297
        %s299 = sand.u32 %s33, 1
        %s300 = smul.addr %s299, 8
        %s301 = scalar_lea.vmem [#allocation4], %s300
        %p302 = pneg %p46
        %p303 = pneg %p43
        %p304 = pneg %p67
        %p305 = pneg %p64
        %p306 = pneg %p88
        %p307 = pneg %p85
        %p308 = pneg %p109
        %p309 = pneg %p106
        %p310 = pneg %p130
        %p311 = pneg %p127
        %p312 = pneg %p151
        %p313 = pneg %p148
        %p314 = pneg %p172
        %p315 = pneg %p169
        %p316 = pneg %p198
        %p317 = pneg %p195
        %s318 = sand.u32 %s185, 1
        %s319 = scalar_lea.sflag [#allocation6], %s318
        %s320 = sand.u32 %s185, 1
        %s321 = smul.addr %s320, 8
        %s322 = scalar_lea.vmem [#allocation10], %s321
        %v325 = vld [vmem:[%s284] sm:$0xff]
        %v326 = vld [vmem:[%s1] sm:$0x1]
        %v327 = vld [vmem:[%s2] sm:$0x1]
        %vm328 = vcmask 261120
        %v329 = vsel %vm328, %v325, 0.0
        %330 = vadd.xlane.f32.xlu0 %v329
        %v331 = vpop.xlane.xlu0 %330
        %v332 = vrcp.pop 32.0
        %v333 = vmul.f32 %v331, %v332
        %v334 = vsub.f32 %v325, %v333
        %v335 = vmul.f32 %v334, %v334
        %v336 = vsel %vm328, %v335, 0.0
        %337 = vadd.xlane.f32.xlu0 %v336
        %v338 = vpop.xlane.xlu0 %337
        %v339 = vmul.f32 %v338, %v332
        %v340 = vadd.f32 %v339, 1e-05
        %v341 = vrsqrt.pop %v340
        %v342 = vmul.f32 %v334, %v341
        %v344 = vlaneseq
        %v345 = vshrl.u32 %v344, 7
        %v346 = vsub.s32 0, %v345
        %v347 = vrot.slane %v326, %v346
        %v349 = vmul.f32 %v342, %v347
        %v351 = vlaneseq
        %v352 = vshrl.u32 %v351, 7
        %v353 = vsub.s32 0, %v352
        %v354 = vrot.slane %v327, %v353
        %v356 = vadd.f32 %v349, %v354
        %v357 = vpack.c.bf16 %v356, %v356
        %v358 = vld [vmem:[#allocation7] sm:$0xf]
        %v359 = vld [vmem:[#allocation7 + $0x4] sm:$0xf]
        %v360 = vld [vmem:[#allocation7 + $0x8] sm:$0xf]
        %v361 = vld [vmem:[#allocation7 + $0xc] sm:$0xf]
        %v362 = vld [vmem:[%s4] sm:$0x1]
        %v364 = vlaneseq
        %v365 = vshrl.u32 %v364, 7
        %v366 = vsub.s32 0, %v365
        %v367 = vrot.slane %v362, %v366
        %v373 = vunpack.c.l.b16 %v358
        %v374 = vunpack.c.l.b16 %v359
        %v375 = vunpack.c.l.b16 %v360
        %v376 = vunpack.c.l.b16 %v361
        %v377 = vpack.c.b16 %v374, %v373
        %v378 = vpack.c.b16 %v376, %v375
        %v382 = vsel %vm328, %v357, 0
        %384 = vmatprep.subr.bf16.mxu0 0
        %385 = vmatpush1.bf16.msra.mxu0 0
        %386 = vmatprep.subr.bf16.mxu0 0
        %387 = vmatpush1.bf16.msra.mxu0 0
        %388 = vmatprep.subr.bf16.mxu0 0
        %389 = vmatpush1.bf16.msra.mxu0 0
        %390 = vmatprep.subr.bf16.mxu0 0
        %391 = vmatpush1.bf16.msra.mxu0 0
        %392 = vmatprep.subr.bf16.mxu0 0
        %393 = vmatpush1.bf16.msra.mxu0 0
        %394 = vmatprep.subr.bf16.mxu0 0
        %395 = vmatpush1.bf16.msra.mxu0 0
        %396 = vmatprep.subr.bf16.mxu0 0
        %397 = vmatpush1.bf16.msra.mxu0 %v378
        %398 = vmatprep.subr.bf16.mxu0 0
        %399 = vmatpush1.bf16.msra.mxu0 %v377
        %400 = vmatprep.subr.bf16.mxu0 0
        %401 = vmatpush2.bf16.msra.mxu0 0
        %402 = vmatprep.subr.bf16.mxu0 0
        %403 = vmatpush2.bf16.msra.mxu0 0
        %404 = vmatprep.subr.bf16.mxu0 0
        %405 = vmatpush2.bf16.msra.mxu0 0
        %406 = vmatprep.subr.bf16.mxu0 0
        %407 = vmatpush2.bf16.msra.mxu0 0
        %408 = vmatprep.subr.bf16.mxu0 0
        %409 = vmatpush2.bf16.msra.mxu0 0
        %410 = vmatprep.subr.bf16.mxu0 0
        %411 = vmatpush2.bf16.msra.mxu0 0
        %412 = vmatprep.subr.bf16.mxu0 0
        %413 = vmatpush2.bf16.msra.mxu0 0
        %414 = vmatprep.subr.bf16.mxu0 0
        %415 = vmatpush2.bf16.msra.mxu0 0
        %416 = vmatprep.mubr.bf16.mxu0 0
        %417 = vmatmul.mubr.bf16.gmra.mxu0 %v382
        %v418 = vpop.f32.mrf.mxu0
        %v419 = vadd.f32 %v367, %v418
        %v420 = vpop.f32.mrf.mxu0
        %v421 = vpop.f32.mrf.mxu0
        %v422 = vpop.f32.mrf.mxu0
        %423 = vdwg.mxu0
        %v424 = vpack.c.bf16 %v419, %v419
        %vm425 = vcmask 781312
        %426 = vst.msk [vmem:[#allocation2] sm:$0xf] %vm425, %v424
        %v427 = vlaneseq
        %v428 = vshrl.u32 %v427, 7
        %v429 = vlaneseq
        %v430 = vand.u32 %v429, 127
        %vm431 = vcmp.le.s32.totalorder %v430, %v428
        %v432 = vld [vmem:[#allocation2] sm:$0xf]
        %v433 = vmul.bf16 %v432, 1052065461
        %v435 = vunpack.c.l.b16 %v432
        %v436 = vpack.c.b16 %v435, %v435
        %437 = vrot.lane.b32.xlu0 %v436, 96
        %v438 = vpop.permute.xlu0 %437
        %vm439 = vcmask 64512
        %v441 = vsel %vm439, %v433, 0
        %v444 = vsel %vm439, %v438, 0
        %446 = vmatprep.subr.bf16.mxu0 0
        %447 = vmatpush1.bf16.xpose.msra.mxu0 0
        %448 = vmatprep.subr.bf16.mxu0 0
        %449 = vmatpush1.bf16.xpose.msra.mxu0 0
        %450 = vmatprep.subr.bf16.mxu0 0
        %451 = vmatpush1.bf16.xpose.msra.mxu0 0
        %452 = vmatprep.subr.bf16.mxu0 0
        %453 = vmatpush1.bf16.xpose.msra.mxu0 0
        %454 = vmatprep.subr.bf16.mxu0 0
        %455 = vmatpush1.bf16.xpose.msra.mxu0 0
        %456 = vmatprep.subr.bf16.mxu0 0
        %457 = vmatpush1.bf16.xpose.msra.mxu0 0
        %458 = vmatprep.subr.bf16.mxu0 0
        %459 = vmatpush1.bf16.xpose.msra.mxu0 0
        %460 = vmatprep.subr.bf16.mxu0 0
        %461 = vmatpush1.bf16.xpose.msra.mxu0 %v444
        %462 = vmatprep.subr.bf16.mxu0 0
        %463 = vmatpush2.bf16.xpose.msra.mxu0 0
        %464 = vmatprep.subr.bf16.mxu0 0
        %465 = vmatpush2.bf16.xpose.msra.mxu0 0
        %466 = vmatprep.subr.bf16.mxu0 0
        %467 = vmatpush2.bf16.xpose.msra.mxu0 0
        %468 = vmatprep.subr.bf16.mxu0 0
        %469 = vmatpush2.bf16.xpose.msra.mxu0 0
        %470 = vmatprep.subr.bf16.mxu0 0
        %471 = vmatpush2.bf16.xpose.msra.mxu0 0
        %472 = vmatprep.subr.bf16.mxu0 0
        %473 = vmatpush2.bf16.xpose.msra.mxu0 0
        %474 = vmatprep.subr.bf16.mxu0 0
        %475 = vmatpush2.bf16.xpose.msra.mxu0 0
        %476 = vmatprep.subr.bf16.mxu0 0
        %477 = vmatpush2.bf16.xpose.msra.mxu0 0
        %478 = vmatprep.mubr.bf16.mxu0 0
        %479 = vmatmul.mubr.bf16.gmra.mxu0 %v441
        %v480 = vpop.f32.mrf.mxu0
        %v481 = vadd.f32 0.0, %v480
        %v482 = vpop.f32.mrf.mxu0
        %v483 = vpop.f32.mrf.mxu0
        %v484 = vpop.f32.mrf.mxu0
        %485 = vdwg.mxu0
        %v486 = vsel %vm431, %v481, -inf
        %v487 = vsel %vm439, %v486, -inf
        %488 = vmax.xlane.f32.xlu0 %v487
        %v489 = vpop.xlane.xlu0 %488
        %v490 = vsub.f32 %v486, %v489
        %v491 = vmul.f32 %v490, 1.442695
        %v492 = vpow.pop %v491
        %v493 = vsel %vm439, %v492, 0.0
        %494 = vadd.xlane.f32.xlu0 %v493
        %v495 = vpop.xlane.xlu0 %494
        %v496 = vpack.c.bf16 %v492, %v492
        %497 = vrot.lane.b32.xlu0 %v436, 64
        %v498 = vpop.permute.xlu0 %497
        %v500 = vsel %vm439, %v496, 0
        %vm502 = vcmask 1043456
        %v504 = vsel %vm502, %v498, 0
        %506 = vmatprep.subr.bf16.mxu0 0
        %507 = vmatpush1.bf16.msra.mxu0 0
        %508 = vmatprep.subr.bf16.mxu0 0
        %509 = vmatpush1.bf16.msra.mxu0 0
        %510 = vmatprep.subr.bf16.mxu0 0
        %511 = vmatpush1.bf16.msra.mxu0 0
        %512 = vmatprep.subr.bf16.mxu0 0
        %513 = vmatpush1.bf16.msra.mxu0 0
        %514 = vmatprep.subr.bf16.mxu0 0
        %515 = vmatpush1.bf16.msra.mxu0 0
        %516 = vmatprep.subr.bf16.mxu0 0
        %517 = vmatpush1.bf16.msra.mxu0 0
        %518 = vmatprep.subr.bf16.mxu0 0
        %519 = vmatpush1.bf16.msra.mxu0 0
        %520 = vmatprep.subr.bf16.mxu0 0
        %521 = vmatpush1.bf16.msra.mxu0 %v504
        %522 = vmatprep.subr.bf16.mxu0 0
        %523 = vmatpush2.bf16.msra.mxu0 0
        %524 = vmatprep.subr.bf16.mxu0 0
        %525 = vmatpush2.bf16.msra.mxu0 0
        %526 = vmatprep.subr.bf16.mxu0 0
        %527 = vmatpush2.bf16.msra.mxu0 0
        %528 = vmatprep.subr.bf16.mxu0 0
        %529 = vmatpush2.bf16.msra.mxu0 0
        %530 = vmatprep.subr.bf16.mxu0 0
        %531 = vmatpush2.bf16.msra.mxu0 0
        %532 = vmatprep.subr.bf16.mxu0 0
        %533 = vmatpush2.bf16.msra.mxu0 0
        %534 = vmatprep.subr.bf16.mxu0 0
        %535 = vmatpush2.bf16.msra.mxu0 0
        %536 = vmatprep.subr.bf16.mxu0 0
        %537 = vmatpush2.bf16.msra.mxu0 0
        %538 = vmatprep.mubr.bf16.mxu0 0
        %539 = vmatmul.mubr.bf16.gmra.mxu0 %v500
        %v540 = vpop.f32.mrf.mxu0
        %v541 = vadd.f32 0.0, %v540
        %v542 = vpop.f32.mrf.mxu0
        %v543 = vpop.f32.mrf.mxu0
        %v544 = vpop.f32.mrf.mxu0
        %545 = vdwg.mxu0
        %v546 = vrcp.pop %v495
        %v547 = vmul.f32 %v541, %v546
        %v548 = vpack.c.bf16 %v547, %v547
        %vm549 = vcmask 60416
        %550 = vst.msk [vmem:[#allocation3] sm:$0xf] %vm549, %v548
        %v551 = vld [vmem:[#allocation2] sm:$0xf]
        %v552 = vmul.bf16 %v551, 1052065461
        %v554 = vunpack.c.l.b16 %v552
        %v555 = vpack.c.b16 %v554, %v554
        %556 = vrot.lane.b32.xlu0 %v555, 120
        %v557 = vpop.permute.xlu0 %556
        %v559 = vunpack.c.l.b16 %v551
        %v560 = vpack.c.b16 %v559, %v559
        %561 = vrot.lane.b32.xlu0 %v560, 88
        %v562 = vpop.permute.xlu0 %561
        %v564 = vsel %vm439, %v557, 0
        %v567 = vsel %vm439, %v562, 0
        %569 = vmatprep.subr.bf16.mxu0 0
        %570 = vmatpush1.bf16.xpose.msra.mxu0 0
        %571 = vmatprep.subr.bf16.mxu0 0
        %572 = vmatpush1.bf16.xpose.msra.mxu0 0
        %573 = vmatprep.subr.bf16.mxu0 0
        %574 = vmatpush1.bf16.xpose.msra.mxu0 0
        %575 = vmatprep.subr.bf16.mxu0 0
        %576 = vmatpush1.bf16.xpose.msra.mxu0 0
        %577 = vmatprep.subr.bf16.mxu0 0
        %578 = vmatpush1.bf16.xpose.msra.mxu0 0
        %579 = vmatprep.subr.bf16.mxu0 0
        %580 = vmatpush1.bf16.xpose.msra.mxu0 0
        %581 = vmatprep.subr.bf16.mxu0 0
        %582 = vmatpush1.bf16.xpose.msra.mxu0 0
        %583 = vmatprep.subr.bf16.mxu0 0
        %584 = vmatpush1.bf16.xpose.msra.mxu0 %v567
        %585 = vmatprep.subr.bf16.mxu0 0
        %586 = vmatpush2.bf16.xpose.msra.mxu0 0
        %587 = vmatprep.subr.bf16.mxu0 0
        %588 = vmatpush2.bf16.xpose.msra.mxu0 0
        %589 = vmatprep.subr.bf16.mxu0 0
        %590 = vmatpush2.bf16.xpose.msra.mxu0 0
        %591 = vmatprep.subr.bf16.mxu0 0
        %592 = vmatpush2.bf16.xpose.msra.mxu0 0
        %593 = vmatprep.subr.bf16.mxu0 0
        %594 = vmatpush2.bf16.xpose.msra.mxu0 0
        %595 = vmatprep.subr.bf16.mxu0 0
        %596 = vmatpush2.bf16.xpose.msra.mxu0 0
        %597 = vmatprep.subr.bf16.mxu0 0
        %598 = vmatpush2.bf16.xpose.msra.mxu0 0
        %599 = vmatprep.subr.bf16.mxu0 0
        %600 = vmatpush2.bf16.xpose.msra.mxu0 0
        %601 = vmatprep.mubr.bf16.mxu0 0
        %602 = vmatmul.mubr.bf16.gmra.mxu0 %v564
        %v603 = vpop.f32.mrf.mxu0
        %v604 = vadd.f32 0.0, %v603
        %v605 = vpop.f32.mrf.mxu0
        %v606 = vpop.f32.mrf.mxu0
        %v607 = vpop.f32.mrf.mxu0
        %608 = vdwg.mxu0
        %v609 = vsel %vm431, %v604, -inf
        %v610 = vsel %vm439, %v609, -inf
        %611 = vmax.xlane.f32.xlu0 %v610
        %v612 = vpop.xlane.xlu0 %611
        %v613 = vsub.f32 %v609, %v612
        %v614 = vmul.f32 %v613, 1.442695
        %v615 = vpow.pop %v614
        %v616 = vsel %vm439, %v615, 0.0
        %617 = vadd.xlane.f32.xlu0 %v616
        %v618 = vpop.xlane.xlu0 %617
        %v619 = vpack.c.bf16 %v615, %v615
        %620 = vrot.lane.b32.xlu0 %v560, 56
        %v621 = vpop.permute.xlu0 %620
        %v623 = vsel %vm439, %v619, 0
        %v626 = vsel %vm502, %v621, 0
        %628 = vmatprep.subr.bf16.mxu0 0
        %629 = vmatpush1.bf16.msra.mxu0 0
        %630 = vmatprep.subr.bf16.mxu0 0
        %631 = vmatpush1.bf16.msra.mxu0 0
        %632 = vmatprep.subr.bf16.mxu0 0
        %633 = vmatpush1.bf16.msra.mxu0 0
        %634 = vmatprep.subr.bf16.mxu0 0
        %635 = vmatpush1.bf16.msra.mxu0 0
        %636 = vmatprep.subr.bf16.mxu0 0
        %637 = vmatpush1.bf16.msra.mxu0 0
        %638 = vmatprep.subr.bf16.mxu0 0
        %639 = vmatpush1.bf16.msra.mxu0 0
        %640 = vmatprep.subr.bf16.mxu0 0
        %641 = vmatpush1.bf16.msra.mxu0 0
        %642 = vmatprep.subr.bf16.mxu0 0
        %643 = vmatpush1.bf16.msra.mxu0 %v626
        %644 = vmatprep.subr.bf16.mxu0 0
        %645 = vmatpush2.bf16.msra.mxu0 0
        %646 = vmatprep.subr.bf16.mxu0 0
        %647 = vmatpush2.bf16.msra.mxu0 0
        %648 = vmatprep.subr.bf16.mxu0 0
        %649 = vmatpush2.bf16.msra.mxu0 0
        %650 = vmatprep.subr.bf16.mxu0 0
        %651 = vmatpush2.bf16.msra.mxu0 0
        %652 = vmatprep.subr.bf16.mxu0 0
        %653 = vmatpush2.bf16.msra.mxu0 0
        %654 = vmatprep.subr.bf16.mxu0 0
        %655 = vmatpush2.bf16.msra.mxu0 0
        %656 = vmatprep.subr.bf16.mxu0 0
        %657 = vmatpush2.bf16.msra.mxu0 0
        %658 = vmatprep.subr.bf16.mxu0 0
        %659 = vmatpush2.bf16.msra.mxu0 0
        %660 = vmatprep.mubr.bf16.mxu0 0
        %661 = vmatmul.mubr.bf16.gmra.mxu0 %v623
        %v662 = vpop.f32.mrf.mxu0
        %v663 = vadd.f32 0.0, %v662
        %v664 = vpop.f32.mrf.mxu0
        %v665 = vpop.f32.mrf.mxu0
        %v666 = vpop.f32.mrf.mxu0
        %667 = vdwg.mxu0
        %v668 = vrcp.pop %v618
        %v669 = vmul.f32 %v663, %v668
        %v670 = vpack.c.bf16 %v669, %v669
        %v672 = vunpack.c.l.b16 %v670
        %v673 = vpack.c.b16 %v672, %v672
        %674 = vrot.lane.b32.xlu0 %v673, 8
        %v675 = vpop.permute.xlu0 %674
        %vm677 = vcmask 126016
        %678 = vst.msk [vmem:[#allocation3] sm:$0xf] %vm677, %v675
        %v679 = vld [vmem:[#allocation2] sm:$0xf]
        %v680 = vmul.bf16 %v679, 1052065461
        %v682 = vunpack.c.l.b16 %v680
        %v683 = vpack.c.b16 %v682, %v682
        %684 = vrot.lane.b32.xlu0 %v683, 112
        %v685 = vpop.permute.xlu0 %684
        %v687 = vunpack.c.l.b16 %v679
        %v688 = vpack.c.b16 %v687, %v687
        %689 = vrot.lane.b32.xlu0 %v688, 80
        %v690 = vpop.permute.xlu0 %689
        %v692 = vsel %vm439, %v685, 0
        %v695 = vsel %vm439, %v690, 0
        %697 = vmatprep.subr.bf16.mxu0 0
        %698 = vmatpush1.bf16.xpose.msra.mxu0 0
        %699 = vmatprep.subr.bf16.mxu0 0
        %700 = vmatpush1.bf16.xpose.msra.mxu0 0
        %701 = vmatprep.subr.bf16.mxu0 0
        %702 = vmatpush1.bf16.xpose.msra.mxu0 0
        %703 = vmatprep.subr.bf16.mxu0 0
        %704 = vmatpush1.bf16.xpose.msra.mxu0 0
        %705 = vmatprep.subr.bf16.mxu0 0
        %706 = vmatpush1.bf16.xpose.msra.mxu0 0
        %707 = vmatprep.subr.bf16.mxu0 0
        %708 = vmatpush1.bf16.xpose.msra.mxu0 0
        %709 = vmatprep.subr.bf16.mxu0 0
        %710 = vmatpush1.bf16.xpose.msra.mxu0 0
        %711 = vmatprep.subr.bf16.mxu0 0
        %712 = vmatpush1.bf16.xpose.msra.mxu0 %v695
        %713 = vmatprep.subr.bf16.mxu0 0
        %714 = vmatpush2.bf16.xpose.msra.mxu0 0
        %715 = vmatprep.subr.bf16.mxu0 0
        %716 = vmatpush2.bf16.xpose.msra.mxu0 0
        %717 = vmatprep.subr.bf16.mxu0 0
        %718 = vmatpush2.bf16.xpose.msra.mxu0 0
        %719 = vmatprep.subr.bf16.mxu0 0
        %720 = vmatpush2.bf16.xpose.msra.mxu0 0
        %721 = vmatprep.subr.bf16.mxu0 0
        %722 = vmatpush2.bf16.xpose.msra.mxu0 0
        %723 = vmatprep.subr.bf16.mxu0 0
        %724 = vmatpush2.bf16.xpose.msra.mxu0 0
        %725 = vmatprep.subr.bf16.mxu0 0
        %726 = vmatpush2.bf16.xpose.msra.mxu0 0
        %727 = vmatprep.subr.bf16.mxu0 0
        %728 = vmatpush2.bf16.xpose.msra.mxu0 0
        %729 = vmatprep.mubr.bf16.mxu0 0
        %730 = vmatmul.mubr.bf16.gmra.mxu0 %v692
        %v731 = vpop.f32.mrf.mxu0
        %v732 = vadd.f32 0.0, %v731
        %v733 = vpop.f32.mrf.mxu0
        %v734 = vpop.f32.mrf.mxu0
        %v735 = vpop.f32.mrf.mxu0
        %736 = vdwg.mxu0
        %v737 = vsel %vm431, %v732, -inf
        %v738 = vsel %vm439, %v737, -inf
        %739 = vmax.xlane.f32.xlu0 %v738
        %v740 = vpop.xlane.xlu0 %739
        %v741 = vsub.f32 %v737, %v740
        %v742 = vmul.f32 %v741, 1.442695
        %v743 = vpow.pop %v742
        %v744 = vsel %vm439, %v743, 0.0
        %745 = vadd.xlane.f32.xlu0 %v744
        %v746 = vpop.xlane.xlu0 %745
        %v747 = vpack.c.bf16 %v743, %v743
        %748 = vrot.lane.b32.xlu0 %v688, 48
        %v749 = vpop.permute.xlu0 %748
        %v751 = vsel %vm439, %v747, 0
        %v754 = vsel %vm502, %v749, 0
        %756 = vmatprep.subr.bf16.mxu0 0
        %757 = vmatpush1.bf16.msra.mxu0 0
        %758 = vmatprep.subr.bf16.mxu0 0
        %759 = vmatpush1.bf16.msra.mxu0 0
        %760 = vmatprep.subr.bf16.mxu0 0
        %761 = vmatpush1.bf16.msra.mxu0 0
        %762 = vmatprep.subr.bf16.mxu0 0
        %763 = vmatpush1.bf16.msra.mxu0 0
        %764 = vmatprep.subr.bf16.mxu0 0
        %765 = vmatpush1.bf16.msra.mxu0 0
        %766 = vmatprep.subr.bf16.mxu0 0
        %767 = vmatpush1.bf16.msra.mxu0 0
        %768 = vmatprep.subr.bf16.mxu0 0
        %769 = vmatpush1.bf16.msra.mxu0 0
        %770 = vmatprep.subr.bf16.mxu0 0
        %771 = vmatpush1.bf16.msra.mxu0 %v754
        %772 = vmatprep.subr.bf16.mxu0 0
        %773 = vmatpush2.bf16.msra.mxu0 0
        %774 = vmatprep.subr.bf16.mxu0 0
        %775 = vmatpush2.bf16.msra.mxu0 0
        %776 = vmatprep.subr.bf16.mxu0 0
        %777 = vmatpush2.bf16.msra.mxu0 0
        %778 = vmatprep.subr.bf16.mxu0 0
        %779 = vmatpush2.bf16.msra.mxu0 0
        %780 = vmatprep.subr.bf16.mxu0 0
        %781 = vmatpush2.bf16.msra.mxu0 0
        %782 = vmatprep.subr.bf16.mxu0 0
        %783 = vmatpush2.bf16.msra.mxu0 0
        %784 = vmatprep.subr.bf16.mxu0 0
        %785 = vmatpush2.bf16.msra.mxu0 0
        %786 = vmatprep.subr.bf16.mxu0 0
        %787 = vmatpush2.bf16.msra.mxu0 0
        %788 = vmatprep.mubr.bf16.mxu0 0
        %789 = vmatmul.mubr.bf16.gmra.mxu0 %v751
        %v790 = vpop.f32.mrf.mxu0
        %v791 = vadd.f32 0.0, %v790
        %v792 = vpop.f32.mrf.mxu0
        %v793 = vpop.f32.mrf.mxu0
        %v794 = vpop.f32.mrf.mxu0
        %795 = vdwg.mxu0
        %v796 = vrcp.pop %v746
        %v797 = vmul.f32 %v791, %v796
        %v798 = vpack.c.bf16 %v797, %v797
        %v800 = vunpack.c.l.b16 %v798
        %v801 = vpack.c.b16 %v800, %v800
        %802 = vrot.lane.b32.xlu0 %v801, 16
        %v803 = vpop.permute.xlu0 %802
        %vm805 = vcmask 191616
        %806 = vst.msk [vmem:[#allocation3] sm:$0xf] %vm805, %v803
        %v807 = vld [vmem:[#allocation2] sm:$0xf]
        %v808 = vmul.bf16 %v807, 1052065461
        %v810 = vunpack.c.l.b16 %v808
        %v811 = vpack.c.b16 %v810, %v810
        %812 = vrot.lane.b32.xlu0 %v811, 104
        %v813 = vpop.permute.xlu0 %812
        %v815 = vunpack.c.l.b16 %v807
        %v816 = vpack.c.b16 %v815, %v815
        %817 = vrot.lane.b32.xlu0 %v816, 72
        %v818 = vpop.permute.xlu0 %817
        %v820 = vsel %vm439, %v813, 0
        %v823 = vsel %vm439, %v818, 0
        %825 = vmatprep.subr.bf16.mxu0 0
        %826 = vmatpush1.bf16.xpose.msra.mxu0 0
        %827 = vmatprep.subr.bf16.mxu0 0
        %828 = vmatpush1.bf16.xpose.msra.mxu0 0
        %829 = vmatprep.subr.bf16.mxu0 0
        %830 = vmatpush1.bf16.xpose.msra.mxu0 0
        %831 = vmatprep.subr.bf16.mxu0 0
        %832 = vmatpush1.bf16.xpose.msra.mxu0 0
        %833 = vmatprep.subr.bf16.mxu0 0
        %834 = vmatpush1.bf16.xpose.msra.mxu0 0
        %835 = vmatprep.subr.bf16.mxu0 0
        %836 = vmatpush1.bf16.xpose.msra.mxu0 0
        %837 = vmatprep.subr.bf16.mxu0 0
        %838 = vmatpush1.bf16.xpose.msra.mxu0 0
        %839 = vmatprep.subr.bf16.mxu0 0
        %840 = vmatpush1.bf16.xpose.msra.mxu0 %v823
        %841 = vmatprep.subr.bf16.mxu0 0
        %842 = vmatpush2.bf16.xpose.msra.mxu0 0
        %843 = vmatprep.subr.bf16.mxu0 0
        %844 = vmatpush2.bf16.xpose.msra.mxu0 0
        %845 = vmatprep.subr.bf16.mxu0 0
        %846 = vmatpush2.bf16.xpose.msra.mxu0 0
        %847 = vmatprep.subr.bf16.mxu0 0
        %848 = vmatpush2.bf16.xpose.msra.mxu0 0
        %849 = vmatprep.subr.bf16.mxu0 0
        %850 = vmatpush2.bf16.xpose.msra.mxu0 0
        %851 = vmatprep.subr.bf16.mxu0 0
        %852 = vmatpush2.bf16.xpose.msra.mxu0 0
        %853 = vmatprep.subr.bf16.mxu0 0
        %854 = vmatpush2.bf16.xpose.msra.mxu0 0
        %855 = vmatprep.subr.bf16.mxu0 0
        %856 = vmatpush2.bf16.xpose.msra.mxu0 0
        %857 = vmatprep.mubr.bf16.mxu0 0
        %858 = vmatmul.mubr.bf16.gmra.mxu0 %v820
        %v859 = vpop.f32.mrf.mxu0
        %v860 = vadd.f32 0.0, %v859
        %v861 = vpop.f32.mrf.mxu0
        %v862 = vpop.f32.mrf.mxu0
        %v863 = vpop.f32.mrf.mxu0
        %864 = vdwg.mxu0
        %v865 = vsel %vm431, %v860, -inf
        %v866 = vsel %vm439, %v865, -inf
        %867 = vmax.xlane.f32.xlu0 %v866
        %v868 = vpop.xlane.xlu0 %867
        %v869 = vsub.f32 %v865, %v868
        %v870 = vmul.f32 %v869, 1.442695
        %v871 = vpow.pop %v870
        %v872 = vsel %vm439, %v871, 0.0
        %873 = vadd.xlane.f32.xlu0 %v872
        %v874 = vpop.xlane.xlu0 %873
        %v875 = vpack.c.bf16 %v871, %v871
        %876 = vrot.lane.b32.xlu0 %v816, 40
        %v877 = vpop.permute.xlu0 %876
        %v879 = vsel %vm439, %v875, 0
        %v882 = vsel %vm502, %v877, 0
        %884 = vmatprep.subr.bf16.mxu0 0
        %885 = vmatpush1.bf16.msra.mxu0 0
        %886 = vmatprep.subr.bf16.mxu0 0
        %887 = vmatpush1.bf16.msra.mxu0 0
        %888 = vmatprep.subr.bf16.mxu0 0
        %889 = vmatpush1.bf16.msra.mxu0 0
        %890 = vmatprep.subr.bf16.mxu0 0
        %891 = vmatpush1.bf16.msra.mxu0 0
        %892 = vmatprep.subr.bf16.mxu0 0
        %893 = vmatpush1.bf16.msra.mxu0 0
        %894 = vmatprep.subr.bf16.mxu0 0
        %895 = vmatpush1.bf16.msra.mxu0 0
        %896 = vmatprep.subr.bf16.mxu0 0
        %897 = vmatpush1.bf16.msra.mxu0 0
        %898 = vmatprep.subr.bf16.mxu0 0
        %899 = vmatpush1.bf16.msra.mxu0 %v882
        %900 = vmatprep.subr.bf16.mxu0 0
        %901 = vmatpush2.bf16.msra.mxu0 0
        %902 = vmatprep.subr.bf16.mxu0 0
        %903 = vmatpush2.bf16.msra.mxu0 0
        %904 = vmatprep.subr.bf16.mxu0 0
        %905 = vmatpush2.bf16.msra.mxu0 0
        %906 = vmatprep.subr.bf16.mxu0 0
        %907 = vmatpush2.bf16.msra.mxu0 0
        %908 = vmatprep.subr.bf16.mxu0 0
        %909 = vmatpush2.bf16.msra.mxu0 0
        %910 = vmatprep.subr.bf16.mxu0 0
        %911 = vmatpush2.bf16.msra.mxu0 0
        %912 = vmatprep.subr.bf16.mxu0 0
        %913 = vmatpush2.bf16.msra.mxu0 0
        %914 = vmatprep.subr.bf16.mxu0 0
        %915 = vmatpush2.bf16.msra.mxu0 0
        %916 = vmatprep.mubr.bf16.mxu0 0
        %917 = vmatmul.mubr.bf16.gmra.mxu0 %v879
        %v918 = vpop.f32.mrf.mxu0
        %v919 = vadd.f32 0.0, %v918
        %v920 = vpop.f32.mrf.mxu0
        %v921 = vpop.f32.mrf.mxu0
        %v922 = vpop.f32.mrf.mxu0
        %923 = vdwg.mxu0
        %v924 = vrcp.pop %v874
        %v925 = vmul.f32 %v919, %v924
        %v926 = vpack.c.bf16 %v925, %v925
        %v928 = vunpack.c.l.b16 %v926
        %v929 = vpack.c.b16 %v928, %v928
        %930 = vrot.lane.b32.xlu0 %v929, 24
        %v931 = vpop.permute.xlu0 %930
        %vm933 = vcmask 257216
        %934 = vst.msk [vmem:[#allocation3] sm:$0xf] %vm933, %v931
        %v935 = vld [vmem:[#allocation3] sm:$0xf]
        %v936 = vld [vmem:[#allocation9] sm:$0xf]
        %v937 = vld [vmem:[#allocation9 + $0x4] sm:$0xf]
        %v938 = vld [vmem:[#allocation9 + $0x8] sm:$0xf]
        %v939 = vld [vmem:[#allocation9 + $0xc] sm:$0xf]
        %v944 = vunpack.c.l.b16 %v936
        %v945 = vunpack.c.l.b16 %v937
        %v946 = vunpack.c.l.b16 %v938
        %v947 = vunpack.c.l.b16 %v939
        %v948 = vpack.c.b16 %v945, %v944
        %v949 = vpack.c.b16 %v947, %v946
        %v953 = vsel %vm328, %v935, 0
        %955 = vmatprep.subr.bf16.mxu0 0
        %956 = vmatpush1.bf16.msra.mxu0 0
        %957 = vmatprep.subr.bf16.mxu0 0
        %958 = vmatpush1.bf16.msra.mxu0 0
        %959 = vmatprep.subr.bf16.mxu0 0
        %960 = vmatpush1.bf16.msra.mxu0 0
        %961 = vmatprep.subr.bf16.mxu0 0
        %962 = vmatpush1.bf16.msra.mxu0 0
        %963 = vmatprep.subr.bf16.mxu0 0
        %964 = vmatpush1.bf16.msra.mxu0 0
        %965 = vmatprep.subr.bf16.mxu0 0
        %966 = vmatpush1.bf16.msra.mxu0 0
        %967 = vmatprep.subr.bf16.mxu0 0
        %968 = vmatpush1.bf16.msra.mxu0 %v949
        %969 = vmatprep.subr.bf16.mxu0 0
        %970 = vmatpush1.bf16.msra.mxu0 %v948
        %971 = vmatprep.subr.bf16.mxu0 0
        %972 = vmatpush2.bf16.msra.mxu0 0
        %973 = vmatprep.subr.bf16.mxu0 0
        %974 = vmatpush2.bf16.msra.mxu0 0
        %975 = vmatprep.subr.bf16.mxu0 0
        %976 = vmatpush2.bf16.msra.mxu0 0
        %977 = vmatprep.subr.bf16.mxu0 0
        %978 = vmatpush2.bf16.msra.mxu0 0
        %979 = vmatprep.subr.bf16.mxu0 0
        %980 = vmatpush2.bf16.msra.mxu0 0
        %981 = vmatprep.subr.bf16.mxu0 0
        %982 = vmatpush2.bf16.msra.mxu0 0
        %983 = vmatprep.subr.bf16.mxu0 0
        %984 = vmatpush2.bf16.msra.mxu0 0
        %985 = vmatprep.subr.bf16.mxu0 0
        %986 = vmatpush2.bf16.msra.mxu0 0
        %987 = vmatprep.mubr.bf16.mxu0 0
        %988 = vmatmul.mubr.bf16.gmra.mxu0 %v953
        %v989 = vpop.f32.mrf.mxu0
        %v990 = vadd.f32 0.0, %v989
        %v991 = vpop.f32.mrf.mxu0
        %v992 = vpop.f32.mrf.mxu0
        %v993 = vpop.f32.mrf.mxu0
        %994 = vdwg.mxu0
        %v995 = vadd.f32 %v325, %v990
        %v996 = vld [vmem:[%s6] sm:$0x1]
        %v998 = vlaneseq
        %v999 = vshrl.u32 %v998, 7
        %v1000 = vsub.s32 0, %v999
        %v1001 = vrot.slane %v996, %v1000
        %v1003 = vadd.f32 %v995, %v1001
        %1004 = vst.msk [vmem:[%s322] sm:$0xff] %vm328, %v1003
        %s1005 = sand.u32 %s185, 1
        %s1006 = scalar_lea.sflag [#allocation6], %s1005
        %s1007 = sand.u32 %s185, 1
        %s1008 = smul.addr %s1007, 8
        %s1009 = scalar_lea.vmem [#allocation10], %s1008
        // Predicated region
        $region61: #{tpu_custom_call.1} parent=47 // pred_check
          %p1010 = pneg %p195
        $region62: #{tpu_custom_call.1} parent=47 // pred_check_branch
          %1012 = sbr.rel (%p1010) target = $region64
        $region63: #{tpu_custom_call.1} parent=47 // pred_region
          %s1014 = ssub.s32 128, 128
          %1015 = vsyncadd %s1006, %s1014
          %s1016 = smul.addr %s25, 128
          %s1017 = scalar_lea.hbm %s7, %s1016
          %s1019 = sshll.u32 %s1009, 4
          %s1020 = int_to_ptr.vmem [resolvable:$true] %s1019
          %1022 = dma.vmem_to_hbm [thread:$0]  %s1020, 128, %s1017, %s1006
        $region64: #{tpu_custom_call.1} parent=47 // pred_fallthru
          _
      $region48: #{tpu_custom_call.1} parent=5 // pred_fallthru
        _
      %p1023 = scmp.le.s32.totalorder 2, %s20
      // Predicated region
      $region65: #{tpu_custom_call.1} parent=5 // pred_check
        %p1024 = pneg %p1023
      $region66: #{tpu_custom_call.1} parent=5 // pred_check_branch
        %1026 = sbr.rel (%p1024) target = $region68
      $region67: #{tpu_custom_call.1} parent=5 // pred_region
        %s1027 = ssub.s32 %s20, 2
        // Predicated region
        $region69: #{tpu_custom_call.1} parent=67 // pred_check
          %p1028 = pneg %p201
        $region70: #{tpu_custom_call.1} parent=67 // pred_check_branch
          %1030 = sbr.rel (%p1028) target = $region72
        $region71: #{tpu_custom_call.1} parent=67 // pred_region
          %s1031 = sand.u32 %s186, 1
          %s1032 = scalar_lea.sflag [#allocation6], %s1031
          %s1033 = sand.u32 %s186, 1
          %s1034 = smul.addr %s1033, 8
          %s1035 = scalar_lea.vmem [#allocation10], %s1034
          %1036 = dma.done %s1032, 128
        $region72: #{tpu_custom_call.1} parent=67 // pred_fallthru
          _
      $region68: #{tpu_custom_call.1} parent=5 // pred_fallthru
        _
    $region6: #{tpu_custom_call.1} parent=1 // loop_footer
      %s24 = sadd.s32 1, %s20
    $region7: #{tpu_custom_call.1} parent=1 // loop_footer_branch
      %19 = sbr.rel target = $region3
    $region8: #{tpu_custom_call.1} parent=1 // loop_exit
      _
    %1037 = vsyncpa [#allocation5], 1
    %s1038 = scalar_lea.sflag [#allocation5], 1
    %1039 = vsyncpa %s1038, 1
    %1040 = vsyncpa [#allocation8], 1
    %1041 = vsyncpa [#allocation6], 1
    %s1042 = scalar_lea.sflag [#allocation6], 1
    %1043 = vsyncpa %s1042, 1

</llo_original>
